<compile_context>
chip_gen: v7x
topology: tpu7x:2x2x1
jax: 0.10.0
libtpu: 0.0.40
codegen_flags: <defaults>
</compile_context>

<pallas_src>
import jax
import jax.numpy as jnp
from jax.experimental import pallas as pl
from jax.experimental.pallas import tpu as pltpu

_BN_EPS = 1e-5
_LANE = 128


def _round_up(n, m):
    return ((n + m - 1) // m) * m


def _mlp_bn_kernel(x_ref, w1_ref, w2_ref, w3_ref, vec_ref, o_ref):
    x = x_ref[...]                      # (B, in_size)  -- true, unpadded shape
    vecs = vec_ref[...]                 # (8, vec_p) packed per-feature vectors
    h1w = w1_ref.shape[1]               # padded hidden1 width (static)
    h2w = w2_ref.shape[1]               # padded hidden2 width (static)
    g1, beta1 = vecs[0:1, :h1w], vecs[1:2, :h1w]
    g2, beta2 = vecs[2:3, :h2w], vecs[3:4, :h2w]
    inv_b = 1.0 / x.shape[0]            # static

    # ---- fc1 (bias cancels in training-mode BN) -> BN (centered var) -> ReLU
    h1 = jnp.dot(x, w1_ref[...], preferred_element_type=jnp.float32)
    m1 = jnp.sum(h1, axis=0, keepdims=True) * inv_b
    c1 = h1 - m1
    v1 = jnp.sum(c1 * c1, axis=0, keepdims=True) * inv_b
    h1 = jnp.maximum(c1 * (g1 * jax.lax.rsqrt(v1 + _BN_EPS)) + beta1, 0.0)

    # ---- fc2 -> BN -> ReLU
    # Padded column `hidden2` becomes a constant 1.0 (scale 0, shift 1) and
    # feeds the fc3-bias row of w3 below; other padded columns stay exactly 0.
    h2 = jnp.dot(h1, w2_ref[...], preferred_element_type=jnp.float32)
    m2 = jnp.sum(h2, axis=0, keepdims=True) * inv_b
    c2 = h2 - m2
    v2 = jnp.sum(c2 * c2, axis=0, keepdims=True) * inv_b
    h2 = jnp.maximum(c2 * (g2 * jax.lax.rsqrt(v2 + _BN_EPS)) + beta2, 0.0)

    # ---- fc3 (bias folded into w3 row `hidden2`), output at true width
    o_ref[...] = jnp.dot(h2, w3_ref[...], preferred_element_type=jnp.float32)


def pack_params(params):
    """Pad only the output-feature dims of w1/w2 to 128 lanes (K and the final
    output width stay at their true sizes), fold b3 into an extra row of w3,
    and pack (g1, beta1, g2, beta2) into a single (8, 128) operand."""
    in_size, h1 = params["w1"].shape
    _, h2 = params["w2"].shape
    _, out_size = params["w3"].shape
    h1_p = _round_up(h1, _LANE)
    h2_p = _round_up(h2, _LANE)
    vec_p = max(h1_p, h2_p)

    # w1: rows (contraction dim) unpadded, columns padded to a full lane width.
    w1 = jnp.pad(params["w1"], ((0, 0), (0, h1_p - h1)))
    # w2: rows padded to h1_p (extra rows are zero -> no effect), cols to h2_p.
    w2 = jnp.pad(params["w2"], ((0, h1_p - h1), (0, h2_p - h2)))
    # w3: rows 0..h2-1 = true weights, row h2 = fc3 bias (picked up by the
    # constant-1 column manufactured in h2), remaining rows zero. Columns stay
    # at the true output width so the kernel writes (B, out_size) directly.
    w3 = jnp.zeros((h2_p, out_size), jnp.float32)
    w3 = w3.at[:h2, :].set(params["w3"])
    w3 = w3.at[h2, :].set(params["b3"].reshape(-1))

    def row(v, n):
        return jnp.pad(v.reshape(1, -1).astype(jnp.float32),
                       ((0, 0), (0, n - v.shape[-1])))

    beta2 = row(params["beta2"], vec_p)
    beta2 = beta2.at[0, h2].set(1.0)     # constant-1 column for the bias fold
    vecs = jnp.concatenate(
        [row(params["g1"], vec_p), row(params["beta1"], vec_p),
         row(params["g2"], vec_p), beta2,
         jnp.zeros((4, vec_p), jnp.float32)],   # pad to 8 sublanes
        axis=0)

    return dict(w1=w1, w2=w2, w3=w3, vecs=vecs)


@jax.jit
def static_reconstruction_forward(x, w1, w2, w3, vecs):
    """x: (B, input_size) float32. Returns (B, output_size) float32.
    One device dispatch: the pallas_call itself (no pad / no slice ops)."""
    B = x.shape[0]
    in_size, h1_p = w1.shape
    h2_p, out_size = w3.shape
    vmem = pl.BlockSpec(memory_space=pltpu.MemorySpace.VMEM)
    flops = 2 * B * (in_size * h1_p + h1_p * h2_p + h2_p * out_size)
    bytes_accessed = 4 * (x.size + w1.size + w2.size + w3.size + vecs.size
                          + B * out_size)
    return pl.pallas_call(
        _mlp_bn_kernel,
        out_shape=jax.ShapeDtypeStruct((B, out_size), jnp.float32),
        in_specs=[vmem] * 5,
        out_specs=vmem,
        cost_estimate=pl.CostEstimate(
            flops=flops, transcendentals=h1_p + h2_p,
            bytes_accessed=bytes_accessed),
    )(x, w1, w2, w3, vecs)


def init_params(key, input_size, hidden_size1, hidden_size2, output_size):
    """Deterministic synthetic init (PyTorch-like uniform fan-in scaling).
    b1/b2 are generated and used by the reference to demonstrate that the
    kernel's bias-drop under training-mode BN is exact."""
    ks = jax.random.split(key, 8)

    def lin(kw, kb, fan_in, fan_out):
        bound = 1.0 / jnp.sqrt(fan_in)
        w = jax.random.uniform(kw, (fan_in, fan_out), jnp.float32, -bound, bound)
        b = jax.random.uniform(kb, (1, fan_out), jnp.float32, -bound, bound)
        return w, b

    w1, b1 = lin(ks[0], ks[1], input_size, hidden_size1)
    w2, b2 = lin(ks[2], ks[3], hidden_size1, hidden_size2)
    w3, b3 = lin(ks[4], ks[5], hidden_size2, output_size)
    g1 = 1.0 + 0.1 * jax.random.normal(ks[6], (1, hidden_size1), jnp.float32)
    beta1 = 0.05 * jnp.arange(hidden_size1, dtype=jnp.float32).reshape(1, -1) / hidden_size1
    g2 = 1.0 + 0.1 * jax.random.normal(ks[7], (1, hidden_size2), jnp.float32)
    beta2 = -0.05 * jnp.arange(hidden_size2, dtype=jnp.float32).reshape(1, -1) / hidden_size2
    return dict(w1=w1, b1=b1, g1=g1, beta1=beta1,
                w2=w2, b2=b2, g2=g2, beta2=beta2,
                w3=w3, b3=b3)


def reference_forward(x, p):
    """Pure-JAX reference matching the PyTorch module (training-mode BN,
    biases included, centered biased variance)."""
    def bn_relu(h, g, beta):
        m = jnp.mean(h, axis=0, keepdims=True)
        v = jnp.mean((h - m) ** 2, axis=0, keepdims=True)
        return jnp.maximum(g * (h - m) / jnp.sqrt(v + _BN_EPS) + beta, 0.0)

    h1 = bn_relu(x @ p["w1"] + p["b1"], p["g1"], p["beta1"])
    h2 = bn_relu(h1 @ p["w2"] + p["b2"], p["g2"], p["beta2"])
    return h2 @ p["w3"] + p["b3"]


if __name__ == "__main__":
    B, input_size, hidden1, hidden2, output_size = 8, 32, 64, 48, 16

    key = jax.random.PRNGKey(0)
    kx, kp = jax.random.split(key)
    x = jax.random.normal(kx, (B, input_size), jnp.float32)
    params = init_params(kp, input_size, hidden1, hidden2, output_size)
    packed = pack_params(params)

    out = static_reconstruction_forward(
        x, packed["w1"], packed["w2"], packed["w3"], packed["vecs"])
    out = jax.block_until_ready(out)

    ref = reference_forward(x, params)
    assert out.shape == (B, output_size)
    assert jnp.allclose(out, ref, atol=1e-4, rtol=1e-4), "mismatch vs reference"

    print("KERNEL_OK")
</pallas_src>

<mosaic_0001>
module attributes {stable_mosaic.version = 11 : i64} {
  func.func @_mlp_bn_kernel(%arg0: memref<8x32xf32, #tpu.memory_space<vmem>>, %arg1: memref<32x128xf32, #tpu.memory_space<vmem>>, %arg2: memref<128x128xf32, #tpu.memory_space<vmem>>, %arg3: memref<128x16xf32, #tpu.memory_space<vmem>>, %arg4: memref<8x128xf32, #tpu.memory_space<vmem>>, %arg5: memref<8x16xf32, #tpu.memory_space<vmem>>) attributes {dimension_semantics = [], scalar_prefetch = 0 : i64, scratch_operands = 0 : i64, tpu.core_type = #tpu.core_type<tc>} {
    %c0 = arith.constant 0 : index
    %c0_0 = arith.constant 0 : index
    %0 = vector.load %arg0[%c0, %c0_0] : memref<8x32xf32, #tpu.memory_space<vmem>>, vector<8x32xf32>
    %c0_1 = arith.constant 0 : index
    %c0_2 = arith.constant 0 : index
    %1 = vector.load %arg4[%c0_1, %c0_2] : memref<8x128xf32, #tpu.memory_space<vmem>>, vector<8x128xf32>
    %2 = vector.extract_strided_slice %1 {offsets = [0, 0], sizes = [1, 128], strides = [1, 1]} : vector<8x128xf32> to vector<1x128xf32>
    %3 = vector.extract_strided_slice %1 {offsets = [1, 0], sizes = [1, 128], strides = [1, 1]} : vector<8x128xf32> to vector<1x128xf32>
    %4 = vector.extract_strided_slice %1 {offsets = [2, 0], sizes = [1, 128], strides = [1, 1]} : vector<8x128xf32> to vector<1x128xf32>
    %5 = vector.extract_strided_slice %1 {offsets = [3, 0], sizes = [1, 128], strides = [1, 1]} : vector<8x128xf32> to vector<1x128xf32>
    %c0_3 = arith.constant 0 : index
    %c0_4 = arith.constant 0 : index
    %6 = vector.load %arg1[%c0_3, %c0_4] : memref<32x128xf32, #tpu.memory_space<vmem>>, vector<32x128xf32>
    %cst = arith.constant dense<0.000000e+00> : vector<8x128xf32>
    %7 = tpu.matmul %0, %6, %cst {dimension_numbers = #tpu.dot_dimension_numbers<[1], [0], [0], [1], [0, 0, 1, 1], [], []>} : vector<8x32xf32>, vector<32x128xf32>, vector<8x128xf32> -> vector<8x128xf32>
    %cst_5 = arith.constant dense<0.000000e+00> : vector<128xf32>
    %8 = vector.multi_reduction <add>, %7, %cst_5 [0] : vector<8x128xf32> to vector<128xf32>
    %9 = vector.shape_cast %8 : vector<128xf32> to vector<1x128xf32>
    %cst_6 = arith.constant 1.250000e-01 : f32
    %10 = vector.broadcast %cst_6 : f32 to vector<1x128xf32>
    %11 = arith.mulf %9, %10 : vector<1x128xf32>
    %12 = vector.broadcast %11 : vector<1x128xf32> to vector<8x128xf32>
    %13 = arith.subf %7, %12 : vector<8x128xf32>
    %14 = arith.mulf %13, %13 : vector<8x128xf32>
    %cst_7 = arith.constant dense<0.000000e+00> : vector<128xf32>
    %15 = vector.multi_reduction <add>, %14, %cst_7 [0] : vector<8x128xf32> to vector<128xf32>
    %16 = vector.shape_cast %15 : vector<128xf32> to vector<1x128xf32>
    %cst_8 = arith.constant 1.250000e-01 : f32
    %17 = vector.broadcast %cst_8 : f32 to vector<1x128xf32>
    %18 = arith.mulf %16, %17 : vector<1x128xf32>
    %cst_9 = arith.constant 9.99999974E-6 : f32
    %19 = vector.broadcast %cst_9 : f32 to vector<1x128xf32>
    %20 = arith.addf %18, %19 : vector<1x128xf32>
    %21 = math.rsqrt %20 : vector<1x128xf32>
    %22 = arith.mulf %2, %21 : vector<1x128xf32>
    %23 = vector.broadcast %22 : vector<1x128xf32> to vector<8x128xf32>
    %24 = arith.mulf %13, %23 : vector<8x128xf32>
    %25 = vector.broadcast %3 : vector<1x128xf32> to vector<8x128xf32>
    %26 = arith.addf %24, %25 : vector<8x128xf32>
    %cst_10 = arith.constant 0.000000e+00 : f32
    %27 = vector.broadcast %cst_10 : f32 to vector<8x128xf32>
    %28 = arith.maximumf %26, %27 : vector<8x128xf32>
    %c0_11 = arith.constant 0 : index
    %c0_12 = arith.constant 0 : index
    %29 = vector.load %arg2[%c0_11, %c0_12] : memref<128x128xf32, #tpu.memory_space<vmem>>, vector<128x128xf32>
    %cst_13 = arith.constant dense<0.000000e+00> : vector<8x128xf32>
    %30 = tpu.matmul %28, %29, %cst_13 {dimension_numbers = #tpu.dot_dimension_numbers<[1], [0], [0], [1], [0, 0, 1, 1], [], []>} : vector<8x128xf32>, vector<128x128xf32>, vector<8x128xf32> -> vector<8x128xf32>
    %cst_14 = arith.constant dense<0.000000e+00> : vector<128xf32>
    %31 = vector.multi_reduction <add>, %30, %cst_14 [0] : vector<8x128xf32> to vector<128xf32>
    %32 = vector.shape_cast %31 : vector<128xf32> to vector<1x128xf32>
    %cst_15 = arith.constant 1.250000e-01 : f32
    %33 = vector.broadcast %cst_15 : f32 to vector<1x128xf32>
    %34 = arith.mulf %32, %33 : vector<1x128xf32>
    %35 = vector.broadcast %34 : vector<1x128xf32> to vector<8x128xf32>
    %36 = arith.subf %30, %35 : vector<8x128xf32>
    %37 = arith.mulf %36, %36 : vector<8x128xf32>
    %cst_16 = arith.constant dense<0.000000e+00> : vector<128xf32>
    %38 = vector.multi_reduction <add>, %37, %cst_16 [0] : vector<8x128xf32> to vector<128xf32>
    %39 = vector.shape_cast %38 : vector<128xf32> to vector<1x128xf32>
    %cst_17 = arith.constant 1.250000e-01 : f32
    %40 = vector.broadcast %cst_17 : f32 to vector<1x128xf32>
    %41 = arith.mulf %39, %40 : vector<1x128xf32>
    %cst_18 = arith.constant 9.99999974E-6 : f32
    %42 = vector.broadcast %cst_18 : f32 to vector<1x128xf32>
    %43 = arith.addf %41, %42 : vector<1x128xf32>
    %44 = math.rsqrt %43 : vector<1x128xf32>
    %45 = arith.mulf %4, %44 : vector<1x128xf32>
    %46 = vector.broadcast %45 : vector<1x128xf32> to vector<8x128xf32>
    %47 = arith.mulf %36, %46 : vector<8x128xf32>
    %48 = vector.broadcast %5 : vector<1x128xf32> to vector<8x128xf32>
    %49 = arith.addf %47, %48 : vector<8x128xf32>
    %cst_19 = arith.constant 0.000000e+00 : f32
    %50 = vector.broadcast %cst_19 : f32 to vector<8x128xf32>
    %51 = arith.maximumf %49, %50 : vector<8x128xf32>
    %c0_20 = arith.constant 0 : index
    %c0_21 = arith.constant 0 : index
    %52 = vector.load %arg3[%c0_20, %c0_21] : memref<128x16xf32, #tpu.memory_space<vmem>>, vector<128x16xf32>
    %cst_22 = arith.constant dense<0.000000e+00> : vector<8x16xf32>
    %53 = tpu.matmul %51, %52, %cst_22 {dimension_numbers = #tpu.dot_dimension_numbers<[1], [0], [0], [1], [0, 0, 1, 1], [], []>} : vector<8x128xf32>, vector<128x16xf32>, vector<8x16xf32> -> vector<8x16xf32>
    %c0_23 = arith.constant 0 : index
    %c0_24 = arith.constant 0 : index
    %54 = vector.load %arg5[%c0_23, %c0_24] : memref<8x16xf32, #tpu.memory_space<vmem>>, vector<8x16xf32>
    tpu.vector_store %arg5[%c0_23, %c0_24], %53 {strides = array<i32>} : memref<8x16xf32, #tpu.memory_space<vmem>>, vector<8x16xf32>,
    return
  }
}

</mosaic_0001>

<llo_original>
// kernel: static_reconstruction_forward.1
$region0: #{static_reconstruction_forward.1}
  #allocation0 [shape = 'u32[]', space=smem, size = 0x4, offset = 0x4, fixed_abs, tag = 'smem constant byte address 0x4 - core index']
  #allocation1 [shape = 'u32[144,128]{1,0:T(1,128)}', space=vmem, size = 0x12000, scoped, tag = 'internal scratch']
  %s0 = inlined_call_operand.vmem [shape: f32[8,32], index: 0, kind: input, shape index: {}]
  %s1 = inlined_call_operand.hbm [shape: f32[32,128], index: 1, kind: input, shape index: {}]
  %s2 = inlined_call_operand.vmem [shape: f32[128,128], index: 2, kind: input, shape index: {}]
  %s3 = inlined_call_operand.vmem [shape: f32[128,16], index: 3, kind: input, shape index: {}]
  %s4 = inlined_call_operand.vmem [shape: f32[8,128], index: 4, kind: input, shape index: {}]
  %s5 = inlined_call_operand.hbm [shape: f32[8,16], index: 5, kind: output, shape index: {}]
  %s6 = sld [smem:[#allocation0]]
  $region34: #{static_reconstruction_forward.1} parent=0
    _
  %s8 = ssub.s32 1, %s6
  %s9 = scalar_select 0, %s8, %s6
  $region1: #{static_reconstruction_forward.1} parent=0
    #allocation2 [shape = 'u8[16384]{0}', space=vmem, size = 0x4000, scoped, tag = 'input window, operand 1, single buffered']
    #allocation3 [shape = 's32[1]{0}', space=sflag, size = 0x4, scoped, tag = 'scoped memory for static_reconstruction_forward.1']
    #allocation4 [shape = 's32[1]{0}', space=sflag, size = 0x4, scoped, tag = 'scoped memory for static_reconstruction_forward.1']
    #allocation5 [shape = 'u8[4096]{0}', space=vmem, size = 0x1000, scoped, tag = 'output window, operand 0, single buffered']
    %10 = vsyncpa [#allocation3], 0
    %11 = vsyncpa [#allocation4], 0
    // Predicated region
    $region2: #{static_reconstruction_forward.1} parent=1 // pred_check
      _
    $region3: #{static_reconstruction_forward.1} parent=1 // pred_check_branch
      %13 = sbr.rel (0) target = $region5
    $region4: #{static_reconstruction_forward.1} parent=1 // pred_region
      _
    $region5: #{static_reconstruction_forward.1} parent=1 // pred_fallthru
      _
    // Predicated region
    $region6: #{static_reconstruction_forward.1} parent=1 // pred_check
      _
    $region7: #{static_reconstruction_forward.1} parent=1 // pred_check_branch
      %15 = sbr.rel (0) target = $region9
    $region8: #{static_reconstruction_forward.1} parent=1 // pred_region
      %s17 = ssub.s32 512, 512
      %18 = vsyncadd [#allocation3], %s17
      %s19 = sshll.u32 [#allocation2], 4
      %s20 = int_to_ptr.vmem [resolvable:$true] %s19
      %25 = dma.hbm_to_vmem [thread:$0]  %s1, 512, %s20, [#allocation3], 128, 128, 8
    $region9: #{static_reconstruction_forward.1} parent=1 // pred_fallthru
      _
    // Predicated region
    $region10: #{static_reconstruction_forward.1} parent=1 // pred_check
      _
    $region11: #{static_reconstruction_forward.1} parent=1 // pred_check_branch
      %27 = sbr.rel (0) target = $region13
    $region12: #{static_reconstruction_forward.1} parent=1 // pred_region
      _
    $region13: #{static_reconstruction_forward.1} parent=1 // pred_fallthru
      _
    // Predicated region
    $region14: #{static_reconstruction_forward.1} parent=1 // pred_check
      _
    $region15: #{static_reconstruction_forward.1} parent=1 // pred_check_branch
      %29 = sbr.rel (0) target = $region17
    $region16: #{static_reconstruction_forward.1} parent=1 // pred_region
      _
    $region17: #{static_reconstruction_forward.1} parent=1 // pred_fallthru
      _
    // Predicated region
    $region18: #{static_reconstruction_forward.1} parent=1 // pred_check
      _
    $region19: #{static_reconstruction_forward.1} parent=1 // pred_check_branch
      %31 = sbr.rel (0) target = $region21
    $region20: #{static_reconstruction_forward.1} parent=1 // pred_region
      _
    $region21: #{static_reconstruction_forward.1} parent=1 // pred_fallthru
      _
    // Predicated region
    $region22: #{static_reconstruction_forward.1} parent=1 // pred_check
      _
    $region23: #{static_reconstruction_forward.1} parent=1 // pred_check_branch
      %33 = sbr.rel (0) target = $region25
    $region24: #{static_reconstruction_forward.1} parent=1 // pred_region
      %34 = dma.done [#allocation3], 512
    $region25: #{static_reconstruction_forward.1} parent=1 // pred_fallthru
      _
    %v35 = vld [vmem:[%s0] sm:$0xff]
    %v36 = vld [vmem:[%s4] sm:$0xff]
    %v37 = vld [vmem:[#allocation2] sm:$0xff]
    %v38 = vld [vmem:[#allocation2 + $0x8] sm:$0xff]
    %v39 = vld [vmem:[#allocation2 + $0x10] sm:$0xff]
    %v40 = vld [vmem:[#allocation2 + $0x18] sm:$0xff]
    %vm41 = vcmask 261120
    %v43 = vsel %vm41, %v35, 0
    %45 = vmatprep.subr.mxu0 0.0
    %46 = vmatpush1.msra.mxu0 %v37
    %47 = vmatprep.subr.mxu0 0.0
    %48 = vmatpush1.msra.mxu0 %v38
    %49 = vmatprep.subr.mxu0 0.0
    %50 = vmatpush1.msra.mxu0 %v39
    %51 = vmatprep.subr.mxu0 0.0
    %52 = vmatpush1.msra.mxu0 %v40
    %53 = vmatprep.subr.mxu0 0.0
    %54 = vmatpush1.msra.mxu0 0.0
    %55 = vmatprep.subr.mxu0 0.0
    %56 = vmatpush1.msra.mxu0 0.0
    %57 = vmatprep.subr.mxu0 0.0
    %58 = vmatpush1.msra.mxu0 0.0
    %59 = vmatprep.subr.mxu0 0.0
    %60 = vmatpush1.msra.mxu0 0.0
    %61 = vmatprep.subr.mxu0 0.0
    %62 = vmatpush1.msra.mxu0 0.0
    %63 = vmatprep.subr.mxu0 0.0
    %64 = vmatpush1.msra.mxu0 0.0
    %65 = vmatprep.subr.mxu0 0.0
    %66 = vmatpush1.msra.mxu0 0.0
    %67 = vmatprep.subr.mxu0 0.0
    %68 = vmatpush1.msra.mxu0 0.0
    %69 = vmatprep.subr.mxu0 0.0
    %70 = vmatpush1.msra.mxu0 0.0
    %71 = vmatprep.subr.mxu0 0.0
    %72 = vmatpush1.msra.mxu0 0.0
    %73 = vmatprep.subr.mxu0 0.0
    %74 = vmatpush1.msra.mxu0 0.0
    %75 = vmatprep.subr.mxu0 0.0
    %76 = vmatpush1.msra.mxu0 0.0
    %77 = vmatprep.subr.mxu0 0.0
    %78 = vmatpush1.msra.mxu0 0.0
    %79 = vmatprep.subr.mxu0 0.0
    %80 = vmatpush1.msra.mxu0 0.0
    %81 = vmatprep.subr.mxu0 0.0
    %82 = vmatpush1.msra.mxu0 0.0
    %83 = vmatprep.subr.mxu0 0.0
    %84 = vmatpush1.msra.mxu0 0.0
    %85 = vmatprep.subr.mxu0 0.0
    %86 = vmatpush1.msra.mxu0 0.0
    %87 = vmatprep.subr.mxu0 0.0
    %88 = vmatpush1.msra.mxu0 0.0
    %89 = vmatprep.subr.mxu0 0.0
    %90 = vmatpush1.msra.mxu0 0.0
    %91 = vmatprep.subr.mxu0 0.0
    %92 = vmatpush1.msra.mxu0 0.0
    %93 = vmatprep.subr.mxu0 0.0
    %94 = vmatpush1.msra.mxu0 0.0
    %95 = vmatprep.subr.mxu0 0.0
    %96 = vmatpush1.msra.mxu0 0.0
    %97 = vmatprep.subr.mxu0 0.0
    %98 = vmatpush1.msra.mxu0 0.0
    %99 = vmatprep.subr.mxu0 0.0
    %100 = vmatpush1.msra.mxu0 0.0
    %101 = vmatprep.subr.mxu0 0.0
    %102 = vmatpush1.msra.mxu0 0.0
    %103 = vmatprep.subr.mxu0 0.0
    %104 = vmatpush1.msra.mxu0 0.0
    %105 = vmatprep.subr.mxu0 0.0
    %106 = vmatpush1.msra.mxu0 0.0
    %107 = vmatprep.subr.mxu0 0.0
    %108 = vmatpush1.msra.mxu0 0.0
    %109 = vmatprep.mubr.f32.mxu0 0.0
    %110 = vmatmul.mubr.f32.gmra.mrb[0].mxu0 %v43
    %v111 = vpop.f32.mrb[0].mxu0
    %v112 = vadd.f32 0.0, %v111
    %v113 = vpop.f32.mrb[0].mxu0
    %114 = vdwg.mxu0
    %v115 = vrot.slane %v112, 4
    %v116 = vadd.f32 %v112, %v115
    %v117 = vrot.slane %v116, 2
    %v118 = vadd.f32 %v116, %v117
    %v119 = vrot.slane %v118, 1
    %v120 = vadd.f32 %v118, %v119
    %v121 = vmul.f32 %v120, 0.125
    %v122 = vsub.f32 %v112, %v121
    %v123 = vmul.f32 %v122, %v122
    %v124 = vrot.slane %v123, 4
    %v125 = vadd.f32 %v123, %v124
    %v126 = vrot.slane %v125, 2
    %v127 = vadd.f32 %v125, %v126
    %v128 = vrot.slane %v127, 1
    %v129 = vadd.f32 %v127, %v128
    %v130 = vmul.f32 %v129, 0.125
    %v131 = vadd.f32 %v130, 1e-05
    %v132 = vrsqrt.pop %v131
    %v133 = vmul.f32 %v36, %v132
    %v134 = vlaneseq
    %v135 = vshrl.u32 %v134, 7
    %v136 = vsub.s32 0, %v135
    %v137 = vrot.slane %v133, %v136
    %v138 = vmul.f32 %v122, %v137
    %v139 = vlaneseq
    %v140 = vshrl.u32 %v139, 7
    %v141 = vsub.s32 1, %v140
    %v142 = vrot.slane %v36, %v141
    %v143 = vadd.f32 %v138, %v142
    %v144 = vmax.f32 %v143, 0.0
    %v145 = vld [vmem:[%s2] sm:$0xff]
    %v146 = vld [vmem:[%s2 + $0x8] sm:$0xff]
    %v147 = vld [vmem:[%s2 + $0x10] sm:$0xff]
    %v148 = vld [vmem:[%s2 + $0x18] sm:$0xff]
    %v149 = vld [vmem:[%s2 + $0x20] sm:$0xff]
    %v150 = vld [vmem:[%s2 + $0x28] sm:$0xff]
    %v151 = vld [vmem:[%s2 + $0x30] sm:$0xff]
    %v152 = vld [vmem:[%s2 + $0x38] sm:$0xff]
    %v153 = vld [vmem:[%s2 + $0x40] sm:$0xff]
    %v154 = vld [vmem:[%s2 + $0x48] sm:$0xff]
    %v155 = vld [vmem:[%s2 + $0x50] sm:$0xff]
    %v156 = vld [vmem:[%s2 + $0x58] sm:$0xff]
    %v157 = vld [vmem:[%s2 + $0x60] sm:$0xff]
    %v158 = vld [vmem:[%s2 + $0x68] sm:$0xff]
    %v159 = vld [vmem:[%s2 + $0x70] sm:$0xff]
    %v160 = vld [vmem:[%s2 + $0x78] sm:$0xff]
    %161 = vmatprep.subr.mxu0 0.0
    %162 = vmatpush1.msra.mxu0 %v145
    %163 = vmatprep.subr.mxu0 0.0
    %164 = vmatpush1.msra.mxu0 %v146
    %165 = vmatprep.subr.mxu0 0.0
    %166 = vmatpush1.msra.mxu0 %v147
    %167 = vmatprep.subr.mxu0 0.0
    %168 = vmatpush1.msra.mxu0 %v148
    %169 = vmatprep.subr.mxu0 0.0
    %170 = vmatpush1.msra.mxu0 %v149
    %171 = vmatprep.subr.mxu0 0.0
    %172 = vmatpush1.msra.mxu0 %v150
    %173 = vmatprep.subr.mxu0 0.0
    %174 = vmatpush1.msra.mxu0 %v151
    %175 = vmatprep.subr.mxu0 0.0
    %176 = vmatpush1.msra.mxu0 %v152
    %177 = vmatprep.subr.mxu0 0.0
    %178 = vmatpush1.msra.mxu0 %v153
    %179 = vmatprep.subr.mxu0 0.0
    %180 = vmatpush1.msra.mxu0 %v154
    %181 = vmatprep.subr.mxu0 0.0
    %182 = vmatpush1.msra.mxu0 %v155
    %183 = vmatprep.subr.mxu0 0.0
    %184 = vmatpush1.msra.mxu0 %v156
    %185 = vmatprep.subr.mxu0 0.0
    %186 = vmatpush1.msra.mxu0 %v157
    %187 = vmatprep.subr.mxu0 0.0
    %188 = vmatpush1.msra.mxu0 %v158
    %189 = vmatprep.subr.mxu0 0.0
    %190 = vmatpush1.msra.mxu0 %v159
    %191 = vmatprep.subr.mxu0 0.0
    %192 = vmatpush1.msra.mxu0 %v160
    %193 = vmatprep.subr.mxu0 0.0
    %194 = vmatpush1.msra.mxu0 0.0
    %195 = vmatprep.subr.mxu0 0.0
    %196 = vmatpush1.msra.mxu0 0.0
    %197 = vmatprep.subr.mxu0 0.0
    %198 = vmatpush1.msra.mxu0 0.0
    %199 = vmatprep.subr.mxu0 0.0
    %200 = vmatpush1.msra.mxu0 0.0
    %201 = vmatprep.subr.mxu0 0.0
    %202 = vmatpush1.msra.mxu0 0.0
    %203 = vmatprep.subr.mxu0 0.0
    %204 = vmatpush1.msra.mxu0 0.0
    %205 = vmatprep.subr.mxu0 0.0
    %206 = vmatpush1.msra.mxu0 0.0
    %207 = vmatprep.subr.mxu0 0.0
    %208 = vmatpush1.msra.mxu0 0.0
    %209 = vmatprep.subr.mxu0 0.0
    %210 = vmatpush1.msra.mxu0 0.0
    %211 = vmatprep.subr.mxu0 0.0
    %212 = vmatpush1.msra.mxu0 0.0
    %213 = vmatprep.subr.mxu0 0.0
    %214 = vmatpush1.msra.mxu0 0.0
    %215 = vmatprep.subr.mxu0 0.0
    %216 = vmatpush1.msra.mxu0 0.0
    %217 = vmatprep.subr.mxu0 0.0
    %218 = vmatpush1.msra.mxu0 0.0
    %219 = vmatprep.subr.mxu0 0.0
    %220 = vmatpush1.msra.mxu0 0.0
    %221 = vmatprep.subr.mxu0 0.0
    %222 = vmatpush1.msra.mxu0 0.0
    %223 = vmatprep.subr.mxu0 0.0
    %224 = vmatpush1.msra.mxu0 0.0
    %225 = vmatprep.mubr.f32.mxu0 0.0
    %226 = vmatmul.mubr.f32.gmra.mrb[0].mxu0 %v144
    %v227 = vpop.f32.mrb[0].mxu0
    %v228 = vadd.f32 0.0, %v227
    %v229 = vpop.f32.mrb[0].mxu0
    %230 = vdwg.mxu0
    %v231 = vrot.slane %v228, 4
    %v232 = vadd.f32 %v228, %v231
    %v233 = vrot.slane %v232, 2
    %v234 = vadd.f32 %v232, %v233
    %v235 = vrot.slane %v234, 1
    %v236 = vadd.f32 %v234, %v235
    %v237 = vmul.f32 %v236, 0.125
    %v238 = vsub.f32 %v228, %v237
    %v239 = vmul.f32 %v238, %v238
    %v240 = vrot.slane %v239, 4
    %v241 = vadd.f32 %v239, %v240
    %v242 = vrot.slane %v241, 2
    %v243 = vadd.f32 %v241, %v242
    %v244 = vrot.slane %v243, 1
    %v245 = vadd.f32 %v243, %v244
    %v246 = vmul.f32 %v245, 0.125
    %v247 = vadd.f32 %v246, 1e-05
    %v248 = vrsqrt.pop %v247
    %v249 = vmul.f32 %v36, %v248
    %v250 = vlaneseq
    %v251 = vshrl.u32 %v250, 7
    %v252 = vsub.s32 2, %v251
    %v253 = vrot.slane %v249, %v252
    %v254 = vmul.f32 %v238, %v253
    %v255 = vlaneseq
    %v256 = vshrl.u32 %v255, 7
    %v257 = vsub.s32 3, %v256
    %v258 = vrot.slane %v36, %v257
    %v259 = vadd.f32 %v254, %v258
    %v260 = vmax.f32 %v259, 0.0
    %v261 = vld [vmem:[%s3] sm:$0xff]
    %v262 = vld [vmem:[%s3 + $0x8] sm:$0xff]
    %v263 = vld [vmem:[%s3 + $0x10] sm:$0xff]
    %v264 = vld [vmem:[%s3 + $0x18] sm:$0xff]
    %v265 = vld [vmem:[%s3 + $0x20] sm:$0xff]
    %v266 = vld [vmem:[%s3 + $0x28] sm:$0xff]
    %v267 = vld [vmem:[%s3 + $0x30] sm:$0xff]
    %v268 = vld [vmem:[%s3 + $0x38] sm:$0xff]
    %v269 = vld [vmem:[%s3 + $0x40] sm:$0xff]
    %v270 = vld [vmem:[%s3 + $0x48] sm:$0xff]
    %v271 = vld [vmem:[%s3 + $0x50] sm:$0xff]
    %v272 = vld [vmem:[%s3 + $0x58] sm:$0xff]
    %v273 = vld [vmem:[%s3 + $0x60] sm:$0xff]
    %v274 = vld [vmem:[%s3 + $0x68] sm:$0xff]
    %v275 = vld [vmem:[%s3 + $0x70] sm:$0xff]
    %v276 = vld [vmem:[%s3 + $0x78] sm:$0xff]
    %277 = vmatprep.subr.mxu0 0.0
    %278 = vmatpush1.msra.mxu0 %v261
    %279 = vmatprep.subr.mxu0 0.0
    %280 = vmatpush1.msra.mxu0 %v262
    %281 = vmatprep.subr.mxu0 0.0
    %282 = vmatpush1.msra.mxu0 %v263
    %283 = vmatprep.subr.mxu0 0.0
    %284 = vmatpush1.msra.mxu0 %v264
    %285 = vmatprep.subr.mxu0 0.0
    %286 = vmatpush1.msra.mxu0 %v265
    %287 = vmatprep.subr.mxu0 0.0
    %288 = vmatpush1.msra.mxu0 %v266
    %289 = vmatprep.subr.mxu0 0.0
    %290 = vmatpush1.msra.mxu0 %v267
    %291 = vmatprep.subr.mxu0 0.0
    %292 = vmatpush1.msra.mxu0 %v268
    %293 = vmatprep.subr.mxu0 0.0
    %294 = vmatpush1.msra.mxu0 %v269
    %295 = vmatprep.subr.mxu0 0.0
    %296 = vmatpush1.msra.mxu0 %v270
    %297 = vmatprep.subr.mxu0 0.0
    %298 = vmatpush1.msra.mxu0 %v271
    %299 = vmatprep.subr.mxu0 0.0
    %300 = vmatpush1.msra.mxu0 %v272
    %301 = vmatprep.subr.mxu0 0.0
    %302 = vmatpush1.msra.mxu0 %v273
    %303 = vmatprep.subr.mxu0 0.0
    %304 = vmatpush1.msra.mxu0 %v274
    %305 = vmatprep.subr.mxu0 0.0
    %306 = vmatpush1.msra.mxu0 %v275
    %307 = vmatprep.subr.mxu0 0.0
    %308 = vmatpush1.msra.mxu0 %v276
    %309 = vmatprep.subr.mxu0 0.0
    %310 = vmatpush1.msra.mxu0 0.0
    %311 = vmatprep.subr.mxu0 0.0
    %312 = vmatpush1.msra.mxu0 0.0
    %313 = vmatprep.subr.mxu0 0.0
    %314 = vmatpush1.msra.mxu0 0.0
    %315 = vmatprep.subr.mxu0 0.0
    %316 = vmatpush1.msra.mxu0 0.0
    %317 = vmatprep.subr.mxu0 0.0
    %318 = vmatpush1.msra.mxu0 0.0
    %319 = vmatprep.subr.mxu0 0.0
    %320 = vmatpush1.msra.mxu0 0.0
    %321 = vmatprep.subr.mxu0 0.0
    %322 = vmatpush1.msra.mxu0 0.0
    %323 = vmatprep.subr.mxu0 0.0
    %324 = vmatpush1.msra.mxu0 0.0
    %325 = vmatprep.subr.mxu0 0.0
    %326 = vmatpush1.msra.mxu0 0.0
    %327 = vmatprep.subr.mxu0 0.0
    %328 = vmatpush1.msra.mxu0 0.0
    %329 = vmatprep.subr.mxu0 0.0
    %330 = vmatpush1.msra.mxu0 0.0
    %331 = vmatprep.subr.mxu0 0.0
    %332 = vmatpush1.msra.mxu0 0.0
    %333 = vmatprep.subr.mxu0 0.0
    %334 = vmatpush1.msra.mxu0 0.0
    %335 = vmatprep.subr.mxu0 0.0
    %336 = vmatpush1.msra.mxu0 0.0
    %337 = vmatprep.subr.mxu0 0.0
    %338 = vmatpush1.msra.mxu0 0.0
    %339 = vmatprep.subr.mxu0 0.0
    %340 = vmatpush1.msra.mxu0 0.0
    %341 = vmatprep.mubr.f32.mxu0 0.0
    %342 = vmatmul.mubr.f32.gmra.mrb[0].mxu0 %v260
    %v343 = vpop.f32.mrb[0].mxu0
    %v344 = vadd.f32 0.0, %v343
    %v345 = vpop.f32.mrb[0].mxu0
    %346 = vdwg.mxu0
    %vm347 = vcmask 130048
    %348 = vst.msk [vmem:[#allocation5] sm:$0xff] %vm347, %v344
    // Predicated region
    $region26: #{static_reconstruction_forward.1} parent=1 // pred_check
      _
    $region27: #{static_reconstruction_forward.1} parent=1 // pred_check_branch
      %350 = sbr.rel (0) target = $region29
    $region28: #{static_reconstruction_forward.1} parent=1 // pred_region
      %s352 = ssub.s32 128, 128
      %353 = vsyncadd [#allocation4], %s352
      %s355 = sshll.u32 [#allocation5], 4
      %s356 = int_to_ptr.vmem [resolvable:$true] %s355
      %358 = dma.vmem_to_hbm [thread:$0]  %s356, 128, %s5, [#allocation4]
    $region29: #{static_reconstruction_forward.1} parent=1 // pred_fallthru
      _
    // Predicated region
    $region30: #{static_reconstruction_forward.1} parent=1 // pred_check
      _
    $region31: #{static_reconstruction_forward.1} parent=1 // pred_check_branch
      %360 = sbr.rel (0) target = $region33
    $region32: #{static_reconstruction_forward.1} parent=1 // pred_region
      %361 = dma.done [#allocation4], 128
    $region33: #{static_reconstruction_forward.1} parent=1 // pred_fallthru
      _
    %362 = vsyncpa [#allocation3], 1
    %363 = vsyncpa [#allocation4], 1

</llo_original>
